<compile_context>
chip_gen: v6e
topology: v6e:2x2x1
jax: 0.10.0
libtpu: 0.0.40
codegen_flags: <defaults>
</compile_context>

<pallas_src>
import math
import functools

import jax
import jax.numpy as jnp
from jax.experimental import pallas as pl
from jax.experimental.pallas import tpu as pltpu


def cross_attention_kernel(x_ref, ctx_ref,
                           wq_ref, bq_ref,
                           wkv_ref, bkv_ref,
                           wo_ref, bo_ref,
                           o_ref,
                           acc_ref,
                           *, batch):
    """One grid step == one attention head, all batches at once.

    x_ref:   (B*Lq, E)        queries, batch flattened into rows
    ctx_ref: (B*Lk, Ckd)      context, batch flattened into rows
    wq_ref:  (1, E, Dh)       this head's query projection (pre-scaled by 1/sqrt(Dh))
    bq_ref:  (1, 1, Dh)
    wkv_ref: (1, Ckd, 2*Dh)   fused K|V projection for this head
    bkv_ref: (1, 1, 2*Dh)
    wo_ref:  (1, Dh, E)       this head's slice of the output projection
    bo_ref:  (1, E)
    o_ref:   (B*Lq, E)        output block (constant across the head axis)
    acc_ref: (B*Lq, E) f32    VMEM accumulator over heads
    """
    h = pl.program_id(0)
    dh = wq_ref.shape[-1]

    x = x_ref[...]                     # (B*Lq, E)
    ctx = ctx_ref[...]                 # (B*Lk, Ckd)
    blq = x.shape[0]
    blk = ctx.shape[0]
    lq = blq // batch
    lk = blk // batch

    # --- per-head projections (weights pre-sliced & pre-transposed by BlockSpec/wrapper) ---
    q2 = jnp.dot(x, wq_ref[0], preferred_element_type=jnp.float32) + bq_ref[0]      # (B*Lq, Dh)
    kv2 = jnp.dot(ctx, wkv_ref[0], preferred_element_type=jnp.float32) + bkv_ref[0]  # (B*Lk, 2*Dh)
    k2 = kv2[:, :dh]
    v2 = kv2[:, dh:]

    qh = q2.reshape(batch, lq, dh)
    kh = k2.reshape(batch, lk, dh)
    vh = v2.reshape(batch, lk, dh)

    # --- batched scaled-dot-product attention over the batch dim (single contraction, no .T) ---
    s = jnp.einsum('bqd,bkd->bqk', qh, kh, preferred_element_type=jnp.float32)       # (B, Lq, Lk)
    s = s - jnp.max(s, axis=-1, keepdims=True)
    p = jnp.exp(s)
    p = p * pl.reciprocal(jnp.sum(p, axis=-1, keepdims=True), approx=True)
    oh = jnp.einsum('bqk,bkd->bqd', p, vh, preferred_element_type=jnp.float32)        # (B, Lq, Dh)

    # --- output projection folded into a reduction over heads (replaces concat + big matmul) ---
    contrib = jnp.dot(oh.reshape(blq, dh), wo_ref[0],
                      preferred_element_type=jnp.float32)                             # (B*Lq, E)

    @pl.when(h == 0)
    def _():
        acc_ref[...] = jnp.broadcast_to(bo_ref[...], acc_ref.shape).astype(jnp.float32)

    acc_ref[...] += contrib
    o_ref[...] = acc_ref[...].astype(o_ref.dtype)


def cross_attention(x, context, params, num_heads):
    """x: (B, Lq, E), context: (B, Lk, Ckd); params in PyTorch (out, in) convention."""
    B, Lq, E = x.shape
    _, Lk, Ckd = context.shape
    assert E % num_heads == 0, "embed_dim must be divisible by num_heads"
    H = num_heads
    Dh = E // H
    scale = 1.0 / math.sqrt(Dh)
    dtype = x.dtype

    # ---- glue (one-time XLA ops, not in the hot kernel) -------------------
    # Transpose PyTorch (out,in) weights, split per head (head blocks are
    # contiguous along the feature dim), fold the softmax scale into Wq/bq,
    # and fuse K|V weights/biases.
    wq_h = (params["wq"].T * scale).reshape(E, H, Dh).transpose(1, 0, 2)          # (H, E, Dh)
    bq_h = (params["bq"] * scale).reshape(H, 1, Dh)                               # (H, 1, Dh)
    wk_h = params["wk"].T.reshape(Ckd, H, Dh).transpose(1, 0, 2)                  # (H, Ckd, Dh)
    wv_h = params["wv"].T.reshape(Ckd, H, Dh).transpose(1, 0, 2)                  # (H, Ckd, Dh)
    wkv_h = jnp.concatenate([wk_h, wv_h], axis=-1)                                # (H, Ckd, 2*Dh)
    bkv_h = jnp.concatenate([params["bk"].reshape(H, 1, Dh),
                             params["bv"].reshape(H, 1, Dh)], axis=-1)            # (H, 1, 2*Dh)
    wo_h = params["wo"].T.reshape(H, Dh, E)                                       # (H, Dh, E)
    bo = params["bo"].reshape(1, E)

    x2 = x.reshape(B * Lq, E)
    ctx2 = context.reshape(B * Lk, Ckd)

    # TODO(synk): for long contexts / large E, add an "arbitrary" Lk grid axis with an
    # online (flash-style) softmax, Lq "parallel" tiling and bf16 MXU operands; at these
    # small shapes a single resident block per head is optimal.
    kernel = functools.partial(cross_attention_kernel, batch=B)
    out = pl.pallas_call(
        kernel,
        out_shape=jax.ShapeDtypeStruct((B * Lq, E), dtype),
        grid_spec=pltpu.PrefetchScalarGridSpec(
            num_scalar_prefetch=0,
            grid=(H,),
            in_specs=[
                pl.BlockSpec((B * Lq, E), lambda h: (0, 0)),
                pl.BlockSpec((B * Lk, Ckd), lambda h: (0, 0)),
                pl.BlockSpec((1, E, Dh), lambda h: (h, 0, 0)),
                pl.BlockSpec((1, 1, Dh), lambda h: (h, 0, 0)),
                pl.BlockSpec((1, Ckd, 2 * Dh), lambda h: (h, 0, 0)),
                pl.BlockSpec((1, 1, 2 * Dh), lambda h: (h, 0, 0)),
                pl.BlockSpec((1, Dh, E), lambda h: (h, 0, 0)),
                pl.BlockSpec((1, E), lambda h: (0, 0)),
            ],
            out_specs=pl.BlockSpec((B * Lq, E), lambda h: (0, 0)),
            scratch_shapes=[pltpu.VMEM((B * Lq, E), jnp.float32)],
        ),
        compiler_params=pltpu.CompilerParams(
            dimension_semantics=("arbitrary",)),
    )(x2, ctx2,
      wq_h.astype(dtype), bq_h.astype(dtype),
      wkv_h.astype(dtype), bkv_h.astype(dtype),
      wo_h.astype(dtype), bo.astype(dtype))
    return out.reshape(B, Lq, E)


def init_params(key, query_dim, context_dim):
    """Deterministic synthetic init matching nn.MultiheadAttention shapes
    (separate q/k/v projections because kdim/vdim != embed_dim)."""
    ks = jax.random.split(key, 8)
    scale_q = 1.0 / math.sqrt(query_dim)
    scale_c = 1.0 / math.sqrt(context_dim)
    return {
        "wq": jax.random.uniform(ks[0], (query_dim, query_dim), jnp.float32,
                                 -scale_q, scale_q),
        "wk": jax.random.uniform(ks[1], (query_dim, context_dim), jnp.float32,
                                 -scale_c, scale_c),
        "wv": jax.random.uniform(ks[2], (query_dim, context_dim), jnp.float32,
                                 -scale_c, scale_c),
        "bq": jax.random.uniform(ks[3], (query_dim,), jnp.float32, -scale_q, scale_q),
        "bk": jax.random.uniform(ks[4], (query_dim,), jnp.float32, -scale_q, scale_q),
        "bv": jax.random.uniform(ks[5], (query_dim,), jnp.float32, -scale_q, scale_q),
        "wo": jax.random.uniform(ks[6], (query_dim, query_dim), jnp.float32,
                                 -scale_q, scale_q),
        "bo": jnp.zeros((query_dim,), jnp.float32),
    }


def reference(x, context, params, num_heads):
    """Pure-JAX reference mirroring torch.nn.MultiheadAttention forward."""
    B, Lq, E = x.shape
    dh = E // num_heads
    q = x @ params["wq"].T + params["bq"]
    k = context @ params["wk"].T + params["bk"]
    v = context @ params["wv"].T + params["bv"]
    q = q.reshape(B, Lq, num_heads, dh).transpose(0, 2, 1, 3) / math.sqrt(dh)
    k = k.reshape(B, -1, num_heads, dh).transpose(0, 2, 1, 3)
    v = v.reshape(B, -1, num_heads, dh).transpose(0, 2, 1, 3)
    s = jnp.einsum("bhqd,bhkd->bhqk", q, k)
    p = jax.nn.softmax(s, axis=-1)
    o = jnp.einsum("bhqk,bhkd->bhqd", p, v)
    o = o.transpose(0, 2, 1, 3).reshape(B, Lq, E)
    return o @ params["wo"].T + params["bo"]


if __name__ == "__main__":
    B, Lq, Lk = 2, 8, 16
    query_dim, context_dim, num_heads = 32, 16, 4

    key = jax.random.PRNGKey(0)
    kx, kc, kp = jax.random.split(key, 3)
    x = jax.random.normal(kx, (B, Lq, query_dim), jnp.float32)
    context = jax.random.normal(kc, (B, Lk, context_dim), jnp.float32)
    params = init_params(kp, query_dim, context_dim)

    out = cross_attention(x, context, params, num_heads)
    out = jax.block_until_ready(out)

    ref = reference(x, context, params, num_heads)
    assert out.shape == (B, Lq, query_dim)
    # approx=True reciprocal shifts the softmax normalizer slightly -> relaxed tolerance.
    assert jnp.allclose(out, ref, atol=2e-3, rtol=2e-3), float(jnp.max(jnp.abs(out - ref)))
    print("KERNEL_OK")
</pallas_src>

<mosaic_0001>
module attributes {stable_mosaic.version = 11 : i64} {
  func.func @cross_attention_kernel(%arg0: i32, %arg1: memref<16x32xf32, #tpu.memory_space<vmem>>, %arg2: memref<32x16xf32, #tpu.memory_space<vmem>>, %arg3: memref<1x32x8xf32, #tpu.memory_space<vmem>>, %arg4: memref<1x1x8xf32, #tpu.memory_space<vmem>>, %arg5: memref<1x16x16xf32, #tpu.memory_space<vmem>>, %arg6: memref<1x1x16xf32, #tpu.memory_space<vmem>>, %arg7: memref<1x8x32xf32, #tpu.memory_space<vmem>>, %arg8: memref<1x32xf32, #tpu.memory_space<vmem>>, %arg9: memref<16x32xf32, #tpu.memory_space<vmem>>, %arg10: memref<16x32xf32, #tpu.memory_space<vmem>>) attributes {dimension_semantics = [#tpu.dimension_semantics<arbitrary>], iteration_bounds = array<i64: 4>, scalar_prefetch = 0 : i64, scratch_operands = 1 : i64, tpu.core_type = #tpu.core_type<tc>, window_params = [{pipeline_mode = #tpu.pipeline_mode<synchronous>, transform_indices = @transform_0, window_bounds = array<i64: 16, 32>}, {pipeline_mode = #tpu.pipeline_mode<synchronous>, transform_indices = @transform_1, window_bounds = array<i64: 32, 16>}, {transform_indices = @transform_2, window_bounds = array<i64: 1, 32, 8>}, {transform_indices = @transform_3, window_bounds = array<i64: 1, 1, 8>}, {transform_indices = @transform_4, window_bounds = array<i64: 1, 16, 16>}, {transform_indices = @transform_5, window_bounds = array<i64: 1, 1, 16>}, {transform_indices = @transform_6, window_bounds = array<i64: 1, 8, 32>}, {pipeline_mode = #tpu.pipeline_mode<synchronous>, transform_indices = @transform_7, window_bounds = array<i64: 1, 32>}, {pipeline_mode = #tpu.pipeline_mode<synchronous>, transform_indices = @transform_8, window_bounds = array<i64: 16, 32>}]} {
    %c0 = arith.constant 0 : index
    %c0_0 = arith.constant 0 : index
    %0 = vector.load %arg1[%c0, %c0_0] : memref<16x32xf32, #tpu.memory_space<vmem>>, vector<16x32xf32>
    %c0_1 = arith.constant 0 : index
    %c0_2 = arith.constant 0 : index
    %1 = vector.load %arg2[%c0_1, %c0_2] : memref<32x16xf32, #tpu.memory_space<vmem>>, vector<32x16xf32>
    %c0_3 = arith.constant 0 : index
    %c0_4 = arith.constant 0 : index
    %c0_5 = arith.constant 0 : index
    %2 = vector.load %arg3[%c0_3, %c0_4, %c0_5] : memref<1x32x8xf32, #tpu.memory_space<vmem>>, vector<1x32x8xf32>
    %3 = vector.shape_cast %2 : vector<1x32x8xf32> to vector<32x8xf32>
    %cst = arith.constant dense<0.000000e+00> : vector<16x8xf32>
    %4 = tpu.matmul %0, %3, %cst {dimension_numbers = #tpu.dot_dimension_numbers<[1], [0], [0], [1], [0, 0, 1, 1], [], []>} : vector<16x32xf32>, vector<32x8xf32>, vector<16x8xf32> -> vector<16x8xf32>
    %c0_6 = arith.constant 0 : index
    %c0_7 = arith.constant 0 : index
    %c0_8 = arith.constant 0 : index
    %5 = vector.load %arg4[%c0_6, %c0_7, %c0_8] : memref<1x1x8xf32, #tpu.memory_space<vmem>>, vector<1x1x8xf32>
    %6 = vector.shape_cast %5 : vector<1x1x8xf32> to vector<1x8xf32>
    %7 = vector.broadcast %6 : vector<1x8xf32> to vector<16x8xf32>
    %8 = arith.addf %4, %7 : vector<16x8xf32>
    %c0_9 = arith.constant 0 : index
    %c0_10 = arith.constant 0 : index
    %c0_11 = arith.constant 0 : index
    %9 = vector.load %arg5[%c0_9, %c0_10, %c0_11] : memref<1x16x16xf32, #tpu.memory_space<vmem>>, vector<1x16x16xf32>
    %10 = vector.shape_cast %9 : vector<1x16x16xf32> to vector<16x16xf32>
    %cst_12 = arith.constant dense<0.000000e+00> : vector<32x16xf32>
    %11 = tpu.matmul %1, %10, %cst_12 {dimension_numbers = #tpu.dot_dimension_numbers<[1], [0], [0], [1], [0, 0, 1, 1], [], []>} : vector<32x16xf32>, vector<16x16xf32>, vector<32x16xf32> -> vector<32x16xf32>
    %c0_13 = arith.constant 0 : index
    %c0_14 = arith.constant 0 : index
    %c0_15 = arith.constant 0 : index
    %12 = vector.load %arg6[%c0_13, %c0_14, %c0_15] : memref<1x1x16xf32, #tpu.memory_space<vmem>>, vector<1x1x16xf32>
    %13 = vector.shape_cast %12 : vector<1x1x16xf32> to vector<1x16xf32>
    %14 = vector.broadcast %13 : vector<1x16xf32> to vector<32x16xf32>
    %15 = arith.addf %11, %14 : vector<32x16xf32>
    %16 = vector.extract_strided_slice %15 {offsets = [0, 0], sizes = [32, 8], strides = [1, 1]} : vector<32x16xf32> to vector<32x8xf32>
    %17 = vector.extract_strided_slice %15 {offsets = [0, 8], sizes = [32, 8], strides = [1, 1]} : vector<32x16xf32> to vector<32x8xf32>
    %18 = vector.shape_cast %8 : vector<16x8xf32> to vector<2x8x8xf32>
    %19 = vector.shape_cast %16 : vector<32x8xf32> to vector<2x16x8xf32>
    %20 = vector.shape_cast %17 : vector<32x8xf32> to vector<2x16x8xf32>
    "tpu.trace_start"() <{level = 10 : i32, message = "bqd,bkd->bqk"}> : () -> ()
    %cst_16 = arith.constant dense<0.000000e+00> : vector<2x8x16xf32>
    %21 = tpu.matmul %18, %19, %cst_16 {dimension_numbers = #tpu.dot_dimension_numbers<[2], [2], [1], [1], [0, 0, 0, 1, 1, 1], [0], [0]>} : vector<2x8x8xf32>, vector<2x16x8xf32>, vector<2x8x16xf32> -> vector<2x8x16xf32>
    "tpu.trace_stop"() : () -> ()
    %cst_17 = arith.constant dense<0xFF800000> : vector<2x8xf32>
    %22 = vector.multi_reduction <maximumf>, %21, %cst_17 [2] : vector<2x8x16xf32> to vector<2x8xf32>
    %23 = vector.shape_cast %22 : vector<2x8xf32> to vector<2x8x1xf32>
    %24 = vector.broadcast %23 : vector<2x8x1xf32> to vector<2x8x16xf32>
    %25 = arith.subf %21, %24 : vector<2x8x16xf32>
    %26 = math.exp %25 : vector<2x8x16xf32>
    %cst_18 = arith.constant dense<0.000000e+00> : vector<2x8xf32>
    %27 = vector.multi_reduction <add>, %26, %cst_18 [2] : vector<2x8x16xf32> to vector<2x8xf32>
    %28 = vector.shape_cast %27 : vector<2x8xf32> to vector<2x8x1xf32>
    %29 = tpu.reciprocal %28 {approx = true} : vector<2x8x1xf32> -> vector<2x8x1xf32>
    %30 = vector.broadcast %29 : vector<2x8x1xf32> to vector<2x8x16xf32>
    %31 = arith.mulf %26, %30 : vector<2x8x16xf32>
    "tpu.trace_start"() <{level = 10 : i32, message = "bqk,bkd->bqd"}> : () -> ()
    %cst_19 = arith.constant dense<0.000000e+00> : vector<2x8x8xf32>
    %32 = tpu.matmul %31, %20, %cst_19 {dimension_numbers = #tpu.dot_dimension_numbers<[2], [1], [1], [2], [0, 0, 0, 1, 1, 2], [0], [0]>} : vector<2x8x16xf32>, vector<2x16x8xf32>, vector<2x8x8xf32> -> vector<2x8x8xf32>
    "tpu.trace_stop"() : () -> ()
    %33 = vector.shape_cast %32 : vector<2x8x8xf32> to vector<16x8xf32>
    %c0_20 = arith.constant 0 : index
    %c0_21 = arith.constant 0 : index
    %c0_22 = arith.constant 0 : index
    %34 = vector.load %arg7[%c0_20, %c0_21, %c0_22] : memref<1x8x32xf32, #tpu.memory_space<vmem>>, vector<1x8x32xf32>
    %35 = vector.shape_cast %34 : vector<1x8x32xf32> to vector<8x32xf32>
    %cst_23 = arith.constant dense<0.000000e+00> : vector<16x32xf32>
    %36 = tpu.matmul %33, %35, %cst_23 {dimension_numbers = #tpu.dot_dimension_numbers<[1], [0], [0], [1], [0, 0, 1, 1], [], []>} : vector<16x8xf32>, vector<8x32xf32>, vector<16x32xf32> -> vector<16x32xf32>
    %c0_i32 = arith.constant 0 : i32
    %37 = arith.cmpi eq, %arg0, %c0_i32 : i32
    %38 = arith.extui %37 : i1 to i32
    %c0_i32_24 = arith.constant 0 : i32
    %39 = arith.cmpi ne, %38, %c0_i32_24 : i32
    scf.if %39 {
      %c0_33 = arith.constant 0 : index
      %c0_34 = arith.constant 0 : index
      %45 = vector.load %arg8[%c0_33, %c0_34] : memref<1x32xf32, #tpu.memory_space<vmem>>, vector<1x32xf32>
      %46 = vector.shape_cast %45 : vector<1x32xf32> to vector<1x32xf32>
      %47 = vector.broadcast %46 : vector<1x32xf32> to vector<16x32xf32>
      %c0_35 = arith.constant 0 : index
      %c0_36 = arith.constant 0 : index
      %48 = vector.load %arg10[%c0_35, %c0_36] : memref<16x32xf32, #tpu.memory_space<vmem>>, vector<16x32xf32>
      tpu.vector_store %arg10[%c0_35, %c0_36], %47 {strides = array<i32>} : memref<16x32xf32, #tpu.memory_space<vmem>>, vector<16x32xf32>,
    } else {
    }
    %c0_25 = arith.constant 0 : index
    %c0_26 = arith.constant 0 : index
    %40 = vector.load %arg10[%c0_25, %c0_26] : memref<16x32xf32, #tpu.memory_space<vmem>>, vector<16x32xf32>
    %41 = arith.addf %40, %36 : vector<16x32xf32>
    %c0_27 = arith.constant 0 : index
    %c0_28 = arith.constant 0 : index
    %42 = vector.load %arg10[%c0_27, %c0_28] : memref<16x32xf32, #tpu.memory_space<vmem>>, vector<16x32xf32>
    tpu.vector_store %arg10[%c0_27, %c0_28], %41 {strides = array<i32>} : memref<16x32xf32, #tpu.memory_space<vmem>>, vector<16x32xf32>,
    %c0_29 = arith.constant 0 : index
    %c0_30 = arith.constant 0 : index
    %43 = vector.load %arg10[%c0_29, %c0_30] : memref<16x32xf32, #tpu.memory_space<vmem>>, vector<16x32xf32>
    %c0_31 = arith.constant 0 : index
    %c0_32 = arith.constant 0 : index
    %44 = vector.load %arg9[%c0_31, %c0_32] : memref<16x32xf32, #tpu.memory_space<vmem>>, vector<16x32xf32>
    tpu.vector_store %arg9[%c0_31, %c0_32], %43 {strides = array<i32>} : memref<16x32xf32, #tpu.memory_space<vmem>>, vector<16x32xf32>,
    return
  }
  func.func @transform_0(%arg0: i32) -> (i32, i32) {
    %c0_i32 = arith.constant 0 : i32
    %c0_i32_0 = arith.constant 0 : i32
    %c0_i32_1 = arith.constant 0 : i32
    return %c0_i32, %c0_i32_0 : i32, i32
  }
  func.func @transform_1(%arg0: i32) -> (i32, i32) {
    %c0_i32 = arith.constant 0 : i32
    %c0_i32_0 = arith.constant 0 : i32
    %c0_i32_1 = arith.constant 0 : i32
    return %c0_i32, %c0_i32_0 : i32, i32
  }
  func.func @transform_2(%arg0: i32) -> (i32, i32, i32) {
    %c0_i32 = arith.constant 0 : i32
    %c0_i32_0 = arith.constant 0 : i32
    %c0_i32_1 = arith.constant 0 : i32
    return %arg0, %c0_i32, %c0_i32_0 : i32, i32, i32
  }
  func.func @transform_3(%arg0: i32) -> (i32, i32, i32) {
    %c0_i32 = arith.constant 0 : i32
    %c0_i32_0 = arith.constant 0 : i32
    %c0_i32_1 = arith.constant 0 : i32
    return %arg0, %c0_i32, %c0_i32_0 : i32, i32, i32
  }
  func.func @transform_4(%arg0: i32) -> (i32, i32, i32) {
    %c0_i32 = arith.constant 0 : i32
    %c0_i32_0 = arith.constant 0 : i32
    %c0_i32_1 = arith.constant 0 : i32
    return %arg0, %c0_i32, %c0_i32_0 : i32, i32, i32
  }
  func.func @transform_5(%arg0: i32) -> (i32, i32, i32) {
    %c0_i32 = arith.constant 0 : i32
    %c0_i32_0 = arith.constant 0 : i32
    %c0_i32_1 = arith.constant 0 : i32
    return %arg0, %c0_i32, %c0_i32_0 : i32, i32, i32
  }
  func.func @transform_6(%arg0: i32) -> (i32, i32, i32) {
    %c0_i32 = arith.constant 0 : i32
    %c0_i32_0 = arith.constant 0 : i32
    %c0_i32_1 = arith.constant 0 : i32
    return %arg0, %c0_i32, %c0_i32_0 : i32, i32, i32
  }
  func.func @transform_7(%arg0: i32) -> (i32, i32) {
    %c0_i32 = arith.constant 0 : i32
    %c0_i32_0 = arith.constant 0 : i32
    %c0_i32_1 = arith.constant 0 : i32
    return %c0_i32, %c0_i32_0 : i32, i32
  }
  func.func @transform_8(%arg0: i32) -> (i32, i32) {
    %c0_i32 = arith.constant 0 : i32
    %c0_i32_0 = arith.constant 0 : i32
    %c0_i32_1 = arith.constant 0 : i32
    return %c0_i32, %c0_i32_0 : i32, i32
  }
}

</mosaic_0001>

<llo_original>
// kernel: tpu_custom_call.1
$region0: #{tpu_custom_call.1}
  #allocation0 [shape = 'u32[]', space=smem, size = 0x4, offset = 0x4, fixed_abs, tag = 'smem constant byte address 0x4 - core index']
  #allocation1 [shape = 'u32[144,128]{1,0:T(1,128)}', space=vmem, size = 0x12000, scoped, tag = 'internal scratch']
  #allocation2 [shape = 'f32[16,32]{1,0:T(8,128)}', space=vmem, size = 0x2000, scoped, tag = 'scratch operand']
  %s0 = inlined_call_operand.vmem [shape: f32[16,32], index: 0, kind: input, shape index: {}]
  %s1 = inlined_call_operand.vmem [shape: f32[32,16], index: 1, kind: input, shape index: {}]
  %s2 = inlined_call_operand.vmem [shape: f32[4,32,8], index: 2, kind: input, shape index: {}]
  %s3 = inlined_call_operand.vmem [shape: f32[4,1,8], index: 3, kind: input, shape index: {}]
  %s4 = inlined_call_operand.vmem [shape: f32[4,16,16], index: 4, kind: input, shape index: {}]
  %s5 = inlined_call_operand.vmem [shape: f32[4,1,16], index: 5, kind: input, shape index: {}]
  %s6 = inlined_call_operand.vmem [shape: f32[4,8,32], index: 6, kind: input, shape index: {}]
  %s7 = inlined_call_operand.vmem [shape: f32[1,32], index: 7, kind: input, shape index: {}]
  %s8 = inlined_call_operand.hbm [shape: f32[16,32], index: 8, kind: output, shape index: {}]
  %s9 = sld [smem:[#allocation0]]
  $region69: #{tpu_custom_call.1} parent=0
    _
  %s11 = ssub.s32 1, %s9
  %s12 = scalar_select 0, %s11, %s9
  $region1: #{tpu_custom_call.1} parent=0
    #allocation3 [shape = 'u8[8192]{0}', space=vmem, size = 0x2000, scoped, tag = 'output window, operand 0, single buffered']
    #allocation4 [shape = 's32[2]{0}', space=sflag, size = 0x8, scoped, tag = 'scoped memory for tpu_custom_call.1']
    %13 = vsyncpa [#allocation4], 0
    loop: start=0, step=1, limit=6
    $region2: #{tpu_custom_call.1} parent=1 // loop_pre_header
      _
    $region3: #{tpu_custom_call.1} parent=1 // loop_header
      %s15 = sphi 0, %s19
      %p16 = scmp.ge.s32.totalorder %s15, 6
      %s23 = sphi 0, %s23
      %s25 = sphi 0, %s23
      %s26 = sphi 0, %s25
      %s40 = sphi 0, %s26
      %s44 = sphi 0, %s44
      %s46 = sphi 0, %s44
      %s47 = sphi 0, %s46
      %s61 = sphi 0, %s47
      %s67 = sphi 0, %s69
      %s70 = sphi 0, %s67
      %s71 = sphi 0, %s70
      %s87 = sphi 0, %s71
      %s93 = sphi 0, %s95
      %s96 = sphi 0, %s93
      %s97 = sphi 0, %s96
      %s113 = sphi 0, %s97
      %s119 = sphi 0, %s121
      %s122 = sphi 0, %s119
      %s123 = sphi 0, %s122
      %s139 = sphi 0, %s123
      %s145 = sphi 0, %s147
      %s148 = sphi 0, %s145
      %s149 = sphi 0, %s148
      %s165 = sphi 0, %s149
      %s171 = sphi 0, %s173
      %s174 = sphi 0, %s171
      %s175 = sphi 0, %s174
      %s191 = sphi 0, %s175
      %s195 = sphi 0, %s195
      %s197 = sphi 0, %s195
      %s198 = sphi 0, %s197
      %s212 = sphi 0, %s198
      %s216 = sphi 0, %s216
      %s218 = sphi 0, %s216
      %s219 = sphi 0, %s218
      %s233 = sphi 0, %s219
    $region4: #{tpu_custom_call.1} parent=1 // loop_header_branch
      %18 = sbr.rel (%p16) target = $region8
    $region5: #{tpu_custom_call.1} parent=1 // loop_body
      %s20 = ssub.s32 %s15, 1
      %s21 = ssub.s32 %s15, 2
      %s22 = sadd.s32 %s15, 1
      %s24 = sadd.s32 %s23, 1
      %p27 = scmp.eq.s32.totalorder %s15, 3
      %p28 = scmp.ne.s32.totalorder %s23, %s25
      %p29 = scmp.eq.s32.totalorder %s15, 0
      %p30 = por %p28, %p29
      %p31 = scmp.ne.s32.totalorder %s23, %s25
      %p32 = scmp.eq.s32.totalorder %s20, 3
      %p33 = por %p31, %p32
      %p34 = scmp.ne.s32.totalorder %s25, %s26
      %p35 = scmp.eq.s32.totalorder %s20, 0
      %p36 = por %p34, %p35
      %p37 = scmp.ne.s32.totalorder %s25, %s26
      %p38 = scmp.eq.s32.totalorder %s21, 3
      %p39 = por %p37, %p38
      %p41 = scmp.ne.s32.totalorder %s26, %s40
      %p42 = scmp.eq.s32.totalorder %s21, 0
      %p43 = por %p41, %p42
      %s45 = sadd.s32 %s44, 1
      %p48 = scmp.eq.s32.totalorder %s15, 3
      %p49 = scmp.ne.s32.totalorder %s44, %s46
      %p50 = scmp.eq.s32.totalorder %s15, 0
      %p51 = por %p49, %p50
      %p52 = scmp.ne.s32.totalorder %s44, %s46
      %p53 = scmp.eq.s32.totalorder %s20, 3
      %p54 = por %p52, %p53
      %p55 = scmp.ne.s32.totalorder %s46, %s47
      %p56 = scmp.eq.s32.totalorder %s20, 0
      %p57 = por %p55, %p56
      %p58 = scmp.ne.s32.totalorder %s46, %s47
      %p59 = scmp.eq.s32.totalorder %s21, 3
      %p60 = por %p58, %p59
      %p62 = scmp.ne.s32.totalorder %s47, %s61
      %p63 = scmp.eq.s32.totalorder %s21, 0
      %p64 = por %p62, %p63
      %s65 = ssub.s32 %s15, %s22
      %p66 = scmp.eq.s32.totalorder %s65, 0
      %s68 = sadd.s32 %s67, 1
      %s69 = scalar_select %p66, %s67, %s68
      %p72 = pneg %p66
      %p73 = scmp.eq.s32.totalorder %s15, 3
      %p74 = por %p72, %p73
      %p75 = scmp.ne.s32.totalorder %s67, %s70
      %p76 = scmp.eq.s32.totalorder %s15, 0
      %p77 = por %p75, %p76
      %p78 = scmp.ne.s32.totalorder %s67, %s70
      %p79 = scmp.eq.s32.totalorder %s20, 3
      %p80 = por %p78, %p79
      %p81 = scmp.ne.s32.totalorder %s70, %s71
      %p82 = scmp.eq.s32.totalorder %s20, 0
      %p83 = por %p81, %p82
      %p84 = scmp.ne.s32.totalorder %s70, %s71
      %p85 = scmp.eq.s32.totalorder %s21, 3
      %p86 = por %p84, %p85
      %p88 = scmp.ne.s32.totalorder %s71, %s87
      %p89 = scmp.eq.s32.totalorder %s21, 0
      %p90 = por %p88, %p89
      %s91 = ssub.s32 %s15, %s22
      %p92 = scmp.eq.s32.totalorder %s91, 0
      %s94 = sadd.s32 %s93, 1
      %s95 = scalar_select %p92, %s93, %s94
      %p98 = pneg %p92
      %p99 = scmp.eq.s32.totalorder %s15, 3
      %p100 = por %p98, %p99
      %p101 = scmp.ne.s32.totalorder %s93, %s96
      %p102 = scmp.eq.s32.totalorder %s15, 0
      %p103 = por %p101, %p102
      %p104 = scmp.ne.s32.totalorder %s93, %s96
      %p105 = scmp.eq.s32.totalorder %s20, 3
      %p106 = por %p104, %p105
      %p107 = scmp.ne.s32.totalorder %s96, %s97
      %p108 = scmp.eq.s32.totalorder %s20, 0
      %p109 = por %p107, %p108
      %p110 = scmp.ne.s32.totalorder %s96, %s97
      %p111 = scmp.eq.s32.totalorder %s21, 3
      %p112 = por %p110, %p111
      %p114 = scmp.ne.s32.totalorder %s97, %s113
      %p115 = scmp.eq.s32.totalorder %s21, 0
      %p116 = por %p114, %p115
      %s117 = ssub.s32 %s15, %s22
      %p118 = scmp.eq.s32.totalorder %s117, 0
      %s120 = sadd.s32 %s119, 1
      %s121 = scalar_select %p118, %s119, %s120
      %p124 = pneg %p118
      %p125 = scmp.eq.s32.totalorder %s15, 3
      %p126 = por %p124, %p125
      %p127 = scmp.ne.s32.totalorder %s119, %s122
      %p128 = scmp.eq.s32.totalorder %s15, 0
      %p129 = por %p127, %p128
      %p130 = scmp.ne.s32.totalorder %s119, %s122
      %p131 = scmp.eq.s32.totalorder %s20, 3
      %p132 = por %p130, %p131
      %p133 = scmp.ne.s32.totalorder %s122, %s123
      %p134 = scmp.eq.s32.totalorder %s20, 0
      %p135 = por %p133, %p134
      %p136 = scmp.ne.s32.totalorder %s122, %s123
      %p137 = scmp.eq.s32.totalorder %s21, 3
      %p138 = por %p136, %p137
      %p140 = scmp.ne.s32.totalorder %s123, %s139
      %p141 = scmp.eq.s32.totalorder %s21, 0
      %p142 = por %p140, %p141
      %s143 = ssub.s32 %s15, %s22
      %p144 = scmp.eq.s32.totalorder %s143, 0
      %s146 = sadd.s32 %s145, 1
      %s147 = scalar_select %p144, %s145, %s146
      %p150 = pneg %p144
      %p151 = scmp.eq.s32.totalorder %s15, 3
      %p152 = por %p150, %p151
      %p153 = scmp.ne.s32.totalorder %s145, %s148
      %p154 = scmp.eq.s32.totalorder %s15, 0
      %p155 = por %p153, %p154
      %p156 = scmp.ne.s32.totalorder %s145, %s148
      %p157 = scmp.eq.s32.totalorder %s20, 3
      %p158 = por %p156, %p157
      %p159 = scmp.ne.s32.totalorder %s148, %s149
      %p160 = scmp.eq.s32.totalorder %s20, 0
      %p161 = por %p159, %p160
      %p162 = scmp.ne.s32.totalorder %s148, %s149
      %p163 = scmp.eq.s32.totalorder %s21, 3
      %p164 = por %p162, %p163
      %p166 = scmp.ne.s32.totalorder %s149, %s165
      %p167 = scmp.eq.s32.totalorder %s21, 0
      %p168 = por %p166, %p167
      %s169 = ssub.s32 %s15, %s22
      %p170 = scmp.eq.s32.totalorder %s169, 0
      %s172 = sadd.s32 %s171, 1
      %s173 = scalar_select %p170, %s171, %s172
      %p176 = pneg %p170
      %p177 = scmp.eq.s32.totalorder %s15, 3
      %p178 = por %p176, %p177
      %p179 = scmp.ne.s32.totalorder %s171, %s174
      %p180 = scmp.eq.s32.totalorder %s15, 0
      %p181 = por %p179, %p180
      %p182 = scmp.ne.s32.totalorder %s171, %s174
      %p183 = scmp.eq.s32.totalorder %s20, 3
      %p184 = por %p182, %p183
      %p185 = scmp.ne.s32.totalorder %s174, %s175
      %p186 = scmp.eq.s32.totalorder %s20, 0
      %p187 = por %p185, %p186
      %p188 = scmp.ne.s32.totalorder %s174, %s175
      %p189 = scmp.eq.s32.totalorder %s21, 3
      %p190 = por %p188, %p189
      %p192 = scmp.ne.s32.totalorder %s175, %s191
      %p193 = scmp.eq.s32.totalorder %s21, 0
      %p194 = por %p192, %p193
      %s196 = sadd.s32 %s195, 1
      %p199 = scmp.eq.s32.totalorder %s15, 3
      %p200 = scmp.ne.s32.totalorder %s195, %s197
      %p201 = scmp.eq.s32.totalorder %s15, 0
      %p202 = por %p200, %p201
      %p203 = scmp.ne.s32.totalorder %s195, %s197
      %p204 = scmp.eq.s32.totalorder %s20, 3
      %p205 = por %p203, %p204
      %p206 = scmp.ne.s32.totalorder %s197, %s198
      %p207 = scmp.eq.s32.totalorder %s20, 0
      %p208 = por %p206, %p207
      %p209 = scmp.ne.s32.totalorder %s197, %s198
      %p210 = scmp.eq.s32.totalorder %s21, 3
      %p211 = por %p209, %p210
      %p213 = scmp.ne.s32.totalorder %s198, %s212
      %p214 = scmp.eq.s32.totalorder %s21, 0
      %p215 = por %p213, %p214
      %s217 = sadd.s32 %s216, 1
      %p220 = scmp.eq.s32.totalorder %s15, 3
      %p221 = scmp.ne.s32.totalorder %s216, %s218
      %p222 = scmp.eq.s32.totalorder %s15, 0
      %p223 = por %p221, %p222
      %p224 = scmp.ne.s32.totalorder %s216, %s218
      %p225 = scmp.eq.s32.totalorder %s20, 3
      %p226 = por %p224, %p225
      %p227 = scmp.ne.s32.totalorder %s218, %s219
      %p228 = scmp.eq.s32.totalorder %s20, 0
      %p229 = por %p227, %p228
      %p230 = scmp.ne.s32.totalorder %s218, %s219
      %p231 = scmp.eq.s32.totalorder %s21, 3
      %p232 = por %p230, %p231
      %p234 = scmp.ne.s32.totalorder %s219, %s233
      %p235 = scmp.eq.s32.totalorder %s21, 0
      %p236 = por %p234, %p235
      %p237 = scmp.le.s32.totalorder 1, %s15
      %p238 = scmp.lt.s32.totalorder %s15, 5
      %p239 = pnand %p237, %p238
      %p240 = pneg %p239
      // Predicated region
      $region9: #{tpu_custom_call.1} parent=5 // pred_check
        _
      $region10: #{tpu_custom_call.1} parent=5 // pred_check_branch
        %242 = sbr.rel (%p239) target = $region12
      $region11: #{tpu_custom_call.1} parent=5 // pred_region
        %s243 = ssub.s32 %s15, 1
        // Predicated region
        $region13: #{tpu_custom_call.1} parent=11 // pred_check
          %p244 = pneg %p36
        $region14: #{tpu_custom_call.1} parent=11 // pred_check_branch
          %246 = sbr.rel (%p244) target = $region16
        $region15: #{tpu_custom_call.1} parent=11 // pred_region
          _
        $region16: #{tpu_custom_call.1} parent=11 // pred_fallthru
          _
        // Predicated region
        $region17: #{tpu_custom_call.1} parent=11 // pred_check
          %p247 = pneg %p57
        $region18: #{tpu_custom_call.1} parent=11 // pred_check_branch
          %249 = sbr.rel (%p247) target = $region20
        $region19: #{tpu_custom_call.1} parent=11 // pred_region
          _
        $region20: #{tpu_custom_call.1} parent=11 // pred_fallthru
          _
        // Predicated region
        $region21: #{tpu_custom_call.1} parent=11 // pred_check
          %p250 = pneg %p208
        $region22: #{tpu_custom_call.1} parent=11 // pred_check_branch
          %252 = sbr.rel (%p250) target = $region24
        $region23: #{tpu_custom_call.1} parent=11 // pred_region
          _
        $region24: #{tpu_custom_call.1} parent=11 // pred_fallthru
          _
      $region12: #{tpu_custom_call.1} parent=5 // pred_fallthru
        _
      %p253 = scmp.lt.s32.totalorder %s15, 4
      // Predicated region
      $region25: #{tpu_custom_call.1} parent=5 // pred_check
        %p254 = pneg %p253
      $region26: #{tpu_custom_call.1} parent=5 // pred_check_branch
        %256 = sbr.rel (%p254) target = $region28
      $region27: #{tpu_custom_call.1} parent=5 // pred_region
        // Predicated region
        $region29: #{tpu_custom_call.1} parent=27 // pred_check
          %p257 = pneg %p77
        $region30: #{tpu_custom_call.1} parent=27 // pred_check_branch
          %259 = sbr.rel (%p257) target = $region32
        $region31: #{tpu_custom_call.1} parent=27 // pred_region
          %p260 = scmp.lt.s32.totalorder %s15, 3
          %s261 = scalar_select %p260, %s15, 3
          %s262 = smul.addr %s261, 4
          %s263 = smul.addr %s262, 8
          %s264 = scalar_lea.vmem %s2, %s263
        $region32: #{tpu_custom_call.1} parent=27 // pred_fallthru
          _
        // Predicated region
        $region33: #{tpu_custom_call.1} parent=27 // pred_check
          %p265 = pneg %p103
        $region34: #{tpu_custom_call.1} parent=27 // pred_check_branch
          %267 = sbr.rel (%p265) target = $region36
        $region35: #{tpu_custom_call.1} parent=27 // pred_region
          %p268 = scmp.lt.s32.totalorder %s15, 3
          %s269 = scalar_select %p268, %s15, 3
          %s270 = scalar_lea.vmem %s3, %s269
        $region36: #{tpu_custom_call.1} parent=27 // pred_fallthru
          _
        // Predicated region
        $region37: #{tpu_custom_call.1} parent=27 // pred_check
          %p271 = pneg %p129
        $region38: #{tpu_custom_call.1} parent=27 // pred_check_branch
          %273 = sbr.rel (%p271) target = $region40
        $region39: #{tpu_custom_call.1} parent=27 // pred_region
          %p274 = scmp.lt.s32.totalorder %s15, 3
          %s275 = scalar_select %p274, %s15, 3
          %s276 = smul.addr %s275, 2
          %s277 = smul.addr %s276, 8
          %s278 = scalar_lea.vmem %s4, %s277
        $region40: #{tpu_custom_call.1} parent=27 // pred_fallthru
          _
        // Predicated region
        $region41: #{tpu_custom_call.1} parent=27 // pred_check
          %p279 = pneg %p155
        $region42: #{tpu_custom_call.1} parent=27 // pred_check_branch
          %281 = sbr.rel (%p279) target = $region44
        $region43: #{tpu_custom_call.1} parent=27 // pred_region
          %p282 = scmp.lt.s32.totalorder %s15, 3
          %s283 = scalar_select %p282, %s15, 3
          %s284 = scalar_lea.vmem %s5, %s283
        $region44: #{tpu_custom_call.1} parent=27 // pred_fallthru
          _
        // Predicated region
        $region45: #{tpu_custom_call.1} parent=27 // pred_check
          %p285 = pneg %p181
        $region46: #{tpu_custom_call.1} parent=27 // pred_check_branch
          %287 = sbr.rel (%p285) target = $region48
        $region47: #{tpu_custom_call.1} parent=27 // pred_region
          %p288 = scmp.lt.s32.totalorder %s15, 3
          %s289 = scalar_select %p288, %s15, 3
          %s290 = smul.addr %s289, 8
          %s291 = scalar_lea.vmem %s6, %s290
        $region48: #{tpu_custom_call.1} parent=27 // pred_fallthru
          _
      $region28: #{tpu_custom_call.1} parent=5 // pred_fallthru
        _
      %p292 = scmp.le.s32.totalorder 1, %s15
      %p293 = scmp.lt.s32.totalorder %s15, 5
      %p294 = pnand %p292, %p293
      %p295 = pneg %p294
      // Predicated region
      $region49: #{tpu_custom_call.1} parent=5 // pred_check
        _
      $region50: #{tpu_custom_call.1} parent=5 // pred_check_branch
        %297 = sbr.rel (%p294) target = $region52
      $region51: #{tpu_custom_call.1} parent=5 // pred_region
        %s298 = ssub.s32 %s15, 1
        %p299 = pneg %p36
        %p300 = pneg %p33
        %p301 = pneg %p57
        %p302 = pneg %p54
        %p303 = scmp.lt.s32.totalorder %s20, 3
        %s304 = scalar_select %p303, %s20, 3
        %s305 = smul.addr %s304, 4
        %s306 = smul.addr %s305, 8
        %s307 = scalar_lea.vmem %s2, %s306
        %p308 = pneg %p83
        %p309 = pneg %p80
        %p310 = scmp.lt.s32.totalorder %s20, 3
        %s311 = scalar_select %p310, %s20, 3
        %s312 = scalar_lea.vmem %s3, %s311
        %p313 = pneg %p109
        %p314 = pneg %p106
        %p315 = scmp.lt.s32.totalorder %s20, 3
        %s316 = scalar_select %p315, %s20, 3
        %s317 = smul.addr %s316, 2
        %s318 = smul.addr %s317, 8
        %s319 = scalar_lea.vmem %s4, %s318
        %p320 = pneg %p135
        %p321 = pneg %p132
        %p322 = scmp.lt.s32.totalorder %s20, 3
        %s323 = scalar_select %p322, %s20, 3
        %s324 = scalar_lea.vmem %s5, %s323
        %p325 = pneg %p161
        %p326 = pneg %p158
        %p327 = scmp.lt.s32.totalorder %s20, 3
        %s328 = scalar_select %p327, %s20, 3
        %s329 = smul.addr %s328, 8
        %s330 = scalar_lea.vmem %s6, %s329
        %p331 = pneg %p187
        %p332 = pneg %p184
        %p333 = pneg %p208
        %p334 = pneg %p205
        %p335 = pneg %p229
        %p336 = pneg %p226
        %p337 = scmp.lt.s32.totalorder %s20, 3
        %s338 = scalar_select %p337, %s20, 3
        %s339 = smul.addr %s338, 4
        %s340 = smul.addr %s339, 8
        %s341 = scalar_lea.vmem %s2, %s340
        %p342 = scmp.lt.s32.totalorder %s20, 3
        %s343 = scalar_select %p342, %s20, 3
        %s344 = scalar_lea.vmem %s3, %s343
        %p345 = scmp.lt.s32.totalorder %s20, 3
        %s346 = scalar_select %p345, %s20, 3
        %s347 = smul.addr %s346, 2
        %s348 = smul.addr %s347, 8
        %s349 = scalar_lea.vmem %s4, %s348
        %p350 = scmp.lt.s32.totalorder %s20, 3
        %s351 = scalar_select %p350, %s20, 3
        %s352 = scalar_lea.vmem %s5, %s351
        %p353 = scmp.lt.s32.totalorder %s20, 3
        %s354 = scalar_select %p353, %s20, 3
        %s355 = smul.addr %s354, 8
        %s356 = scalar_lea.vmem %s6, %s355
        %v357 = vld [vmem:[%s0] sm:$0xff]
        %v358 = vld [vmem:[%s0 + $0x8] sm:$0xff]
        %v359 = vld [vmem:[%s1] sm:$0xff]
        %v360 = vld [vmem:[%s1 + $0x8] sm:$0xff]
        %v361 = vld [vmem:[%s1 + $0x10] sm:$0xff]
        %v362 = vld [vmem:[%s1 + $0x18] sm:$0xff]
        %v363 = vld [vmem:[%s341] sm:$0xff]
        %v364 = vld [vmem:[%s341 + $0x8] sm:$0xff]
        %v365 = vld [vmem:[%s341 + $0x10] sm:$0xff]
        %v366 = vld [vmem:[%s341 + $0x18] sm:$0xff]
        %v367 = vld [vmem:[%s344] sm:$0x1]
        %v369 = vlaneseq
        %v370 = vshrl.u32 %v369, 7
        %v371 = vsub.s32 0, %v370
        %v372 = vrot.slane %v367, %v371
        %vm374 = vcmask 261120
        %v376 = vsel %vm374, %v357, 0
        %v379 = vsel %vm374, %v358, 0
        %381 = vmatprep.subr.mxu0 0.0
        %382 = vmatpush1.msra.mxu0 0.0
        %383 = vmatprep.subr.mxu0 0.0
        %384 = vmatpush1.msra.mxu0 0.0
        %385 = vmatprep.subr.mxu0 0.0
        %386 = vmatpush1.msra.mxu0 0.0
        %387 = vmatprep.subr.mxu0 0.0
        %388 = vmatpush1.msra.mxu0 0.0
        %389 = vmatprep.subr.mxu0 0.0
        %390 = vmatpush1.msra.mxu0 0.0
        %391 = vmatprep.subr.mxu0 0.0
        %392 = vmatpush1.msra.mxu0 0.0
        %393 = vmatprep.subr.mxu0 0.0
        %394 = vmatpush1.msra.mxu0 0.0
        %395 = vmatprep.subr.mxu0 0.0
        %396 = vmatpush1.msra.mxu0 0.0
        %397 = vmatprep.subr.mxu0 0.0
        %398 = vmatpush1.msra.mxu0 0.0
        %399 = vmatprep.subr.mxu0 0.0
        %400 = vmatpush1.msra.mxu0 0.0
        %401 = vmatprep.subr.mxu0 0.0
        %402 = vmatpush1.msra.mxu0 0.0
        %403 = vmatprep.subr.mxu0 0.0
        %404 = vmatpush1.msra.mxu0 0.0
        %405 = vmatprep.subr.mxu0 0.0
        %406 = vmatpush1.msra.mxu0 %v366
        %407 = vmatprep.subr.mxu0 0.0
        %408 = vmatpush1.msra.mxu0 %v365
        %409 = vmatprep.subr.mxu0 0.0
        %410 = vmatpush1.msra.mxu0 %v364
        %411 = vmatprep.subr.mxu0 0.0
        %412 = vmatpush1.msra.mxu0 %v363
        %413 = vmatprep.subr.mxu0 0.0
        %414 = vmatpush2.msra.mxu0 0.0
        %415 = vmatprep.subr.mxu0 0.0
        %416 = vmatpush2.msra.mxu0 0.0
        %417 = vmatprep.subr.mxu0 0.0
        %418 = vmatpush2.msra.mxu0 0.0
        %419 = vmatprep.subr.mxu0 0.0
        %420 = vmatpush2.msra.mxu0 0.0
        %421 = vmatprep.subr.mxu0 0.0
        %422 = vmatpush2.msra.mxu0 0.0
        %423 = vmatprep.subr.mxu0 0.0
        %424 = vmatpush2.msra.mxu0 0.0
        %425 = vmatprep.subr.mxu0 0.0
        %426 = vmatpush2.msra.mxu0 0.0
        %427 = vmatprep.subr.mxu0 0.0
        %428 = vmatpush2.msra.mxu0 0.0
        %429 = vmatprep.subr.mxu0 0.0
        %430 = vmatpush2.msra.mxu0 0.0
        %431 = vmatprep.subr.mxu0 0.0
        %432 = vmatpush2.msra.mxu0 0.0
        %433 = vmatprep.subr.mxu0 0.0
        %434 = vmatpush2.msra.mxu0 0.0
        %435 = vmatprep.subr.mxu0 0.0
        %436 = vmatpush2.msra.mxu0 0.0
        %437 = vmatprep.subr.mxu0 0.0
        %438 = vmatpush2.msra.mxu0 0.0
        %439 = vmatprep.subr.mxu0 0.0
        %440 = vmatpush2.msra.mxu0 0.0
        %441 = vmatprep.subr.mxu0 0.0
        %442 = vmatpush2.msra.mxu0 0.0
        %443 = vmatprep.subr.mxu0 0.0
        %444 = vmatpush2.msra.mxu0 0.0
        %445 = vmatprep.mubr.f32.mxu0 0.0
        %446 = vmatmul.mubr.f32.gmra.mxu0 %v376
        %v447 = vpop.f32.mrf.mxu0
        %v448 = vadd.f32 %v372, %v447
        %v449 = vpop.f32.mrf.mxu0
        %450 = vmatprep.mubr.f32.mxu0 0.0
        %451 = vmatmul.mubr.f32.gmra.mxu0 %v379
        %v452 = vpop.f32.mrf.mxu0
        %v453 = vadd.f32 %v372, %v452
        %v454 = vpop.f32.mrf.mxu0
        %455 = vdwg.mxu0
        %v456 = vld [vmem:[%s349] sm:$0xff]
        %v457 = vld [vmem:[%s349 + $0x8] sm:$0xff]
        %v458 = vld [vmem:[%s352] sm:$0x1]
        %v460 = vlaneseq
        %v461 = vshrl.u32 %v460, 7
        %v462 = vsub.s32 0, %v461
        %v463 = vrot.slane %v458, %v462
        %vm465 = vcmask 130048
        %v467 = vsel %vm465, %v359, 0
        %v470 = vsel %vm465, %v360, 0
        %v473 = vsel %vm465, %v361, 0
        %v476 = vsel %vm465, %v362, 0
        %478 = vmatprep.subr.mxu0 0.0
        %479 = vmatpush1.msra.mxu0 0.0
        %480 = vmatprep.subr.mxu0 0.0
        %481 = vmatpush1.msra.mxu0 0.0
        %482 = vmatprep.subr.mxu0 0.0
        %483 = vmatpush1.msra.mxu0 0.0
        %484 = vmatprep.subr.mxu0 0.0
        %485 = vmatpush1.msra.mxu0 0.0
        %486 = vmatprep.subr.mxu0 0.0
        %487 = vmatpush1.msra.mxu0 0.0
        %488 = vmatprep.subr.mxu0 0.0
        %489 = vmatpush1.msra.mxu0 0.0
        %490 = vmatprep.subr.mxu0 0.0
        %491 = vmatpush1.msra.mxu0 0.0
        %492 = vmatprep.subr.mxu0 0.0
        %493 = vmatpush1.msra.mxu0 0.0
        %494 = vmatprep.subr.mxu0 0.0
        %495 = vmatpush1.msra.mxu0 0.0
        %496 = vmatprep.subr.mxu0 0.0
        %497 = vmatpush1.msra.mxu0 0.0
        %498 = vmatprep.subr.mxu0 0.0
        %499 = vmatpush1.msra.mxu0 0.0
        %500 = vmatprep.subr.mxu0 0.0
        %501 = vmatpush1.msra.mxu0 0.0
        %502 = vmatprep.subr.mxu0 0.0
        %503 = vmatpush1.msra.mxu0 0.0
        %504 = vmatprep.subr.mxu0 0.0
        %505 = vmatpush1.msra.mxu0 0.0
        %506 = vmatprep.subr.mxu0 0.0
        %507 = vmatpush1.msra.mxu0 %v457
        %508 = vmatprep.subr.mxu0 0.0
        %509 = vmatpush1.msra.mxu0 %v456
        %510 = vmatprep.subr.mxu0 0.0
        %511 = vmatpush2.msra.mxu0 0.0
        %512 = vmatprep.subr.mxu0 0.0
        %513 = vmatpush2.msra.mxu0 0.0
        %514 = vmatprep.subr.mxu0 0.0
        %515 = vmatpush2.msra.mxu0 0.0
        %516 = vmatprep.subr.mxu0 0.0
        %517 = vmatpush2.msra.mxu0 0.0
        %518 = vmatprep.subr.mxu0 0.0
        %519 = vmatpush2.msra.mxu0 0.0
        %520 = vmatprep.subr.mxu0 0.0
        %521 = vmatpush2.msra.mxu0 0.0
        %522 = vmatprep.subr.mxu0 0.0
        %523 = vmatpush2.msra.mxu0 0.0
        %524 = vmatprep.subr.mxu0 0.0
        %525 = vmatpush2.msra.mxu0 0.0
        %526 = vmatprep.subr.mxu0 0.0
        %527 = vmatpush2.msra.mxu0 0.0
        %528 = vmatprep.subr.mxu0 0.0
        %529 = vmatpush2.msra.mxu0 0.0
        %530 = vmatprep.subr.mxu0 0.0
        %531 = vmatpush2.msra.mxu0 0.0
        %532 = vmatprep.subr.mxu0 0.0
        %533 = vmatpush2.msra.mxu0 0.0
        %534 = vmatprep.subr.mxu0 0.0
        %535 = vmatpush2.msra.mxu0 0.0
        %536 = vmatprep.subr.mxu0 0.0
        %537 = vmatpush2.msra.mxu0 0.0
        %538 = vmatprep.subr.mxu0 0.0
        %539 = vmatpush2.msra.mxu0 0.0
        %540 = vmatprep.subr.mxu0 0.0
        %541 = vmatpush2.msra.mxu0 0.0
        %542 = vmatprep.mubr.f32.mxu0 0.0
        %543 = vmatmul.mubr.f32.gmra.mxu0 %v467
        %v544 = vpop.f32.mrf.mxu0
        %v545 = vadd.f32 %v463, %v544
        %v546 = vpop.f32.mrf.mxu0
        %547 = vmatprep.mubr.f32.mxu0 0.0
        %548 = vmatmul.mubr.f32.gmra.mxu0 %v470
        %v549 = vpop.f32.mrf.mxu0
        %v550 = vadd.f32 %v463, %v549
        %v551 = vpop.f32.mrf.mxu0
        %552 = vmatprep.mubr.f32.mxu0 0.0
        %553 = vmatmul.mubr.f32.gmra.mxu0 %v473
        %v554 = vpop.f32.mrf.mxu0
        %v555 = vadd.f32 %v463, %v554
        %v556 = vpop.f32.mrf.mxu0
        %557 = vmatprep.mubr.f32.mxu0 0.0
        %558 = vmatmul.mubr.f32.gmra.mxu0 %v476
        %v559 = vpop.f32.mrf.mxu0
        %v560 = vadd.f32 %v463, %v559
        %v561 = vpop.f32.mrf.mxu0
        %562 = vdwg.mxu0
        %vm563 = vcmask 64512
        %v565 = vsel %vm563, %v448, 0
        %v568 = vsel %vm563, %v545, 0
        %v571 = vsel %vm563, %v550, 0
        %573 = vmatprep.subr.mxu0 0.0
        %574 = vmatpush1.xpose.msra.mxu0 0.0
        %575 = vmatprep.subr.mxu0 0.0
        %576 = vmatpush1.xpose.msra.mxu0 0.0
        %577 = vmatprep.subr.mxu0 0.0
        %578 = vmatpush1.xpose.msra.mxu0 0.0
        %579 = vmatprep.subr.mxu0 0.0
        %580 = vmatpush1.xpose.msra.mxu0 0.0
        %581 = vmatprep.subr.mxu0 0.0
        %582 = vmatpush1.xpose.msra.mxu0 0.0
        %583 = vmatprep.subr.mxu0 0.0
        %584 = vmatpush1.xpose.msra.mxu0 0.0
        %585 = vmatprep.subr.mxu0 0.0
        %586 = vmatpush1.xpose.msra.mxu0 0.0
        %587 = vmatprep.subr.mxu0 0.0
        %588 = vmatpush1.xpose.msra.mxu0 0.0
        %589 = vmatprep.subr.mxu0 0.0
        %590 = vmatpush1.xpose.msra.mxu0 0.0
        %591 = vmatprep.subr.mxu0 0.0
        %592 = vmatpush1.xpose.msra.mxu0 0.0
        %593 = vmatprep.subr.mxu0 0.0
        %594 = vmatpush1.xpose.msra.mxu0 0.0
        %595 = vmatprep.subr.mxu0 0.0
        %596 = vmatpush1.xpose.msra.mxu0 0.0
        %597 = vmatprep.subr.mxu0 0.0
        %598 = vmatpush1.xpose.msra.mxu0 0.0
        %599 = vmatprep.subr.mxu0 0.0
        %600 = vmatpush1.xpose.msra.mxu0 0.0
        %601 = vmatprep.subr.mxu0 0.0
        %602 = vmatpush1.xpose.msra.mxu0 %v571
        %603 = vmatprep.subr.mxu0 0.0
        %604 = vmatpush1.xpose.msra.mxu0 %v568
        %605 = vmatprep.subr.mxu0 0.0
        %606 = vmatpush2.xpose.msra.mxu0 0.0
        %607 = vmatprep.subr.mxu0 0.0
        %608 = vmatpush2.xpose.msra.mxu0 0.0
        %609 = vmatprep.subr.mxu0 0.0
        %610 = vmatpush2.xpose.msra.mxu0 0.0
        %611 = vmatprep.subr.mxu0 0.0
        %612 = vmatpush2.xpose.msra.mxu0 0.0
        %613 = vmatprep.subr.mxu0 0.0
        %614 = vmatpush2.xpose.msra.mxu0 0.0
        %615 = vmatprep.subr.mxu0 0.0
        %616 = vmatpush2.xpose.msra.mxu0 0.0
        %617 = vmatprep.subr.mxu0 0.0
        %618 = vmatpush2.xpose.msra.mxu0 0.0
        %619 = vmatprep.subr.mxu0 0.0
        %620 = vmatpush2.xpose.msra.mxu0 0.0
        %621 = vmatprep.subr.mxu0 0.0
        %622 = vmatpush2.xpose.msra.mxu0 0.0
        %623 = vmatprep.subr.mxu0 0.0
        %624 = vmatpush2.xpose.msra.mxu0 0.0
        %625 = vmatprep.subr.mxu0 0.0
        %626 = vmatpush2.xpose.msra.mxu0 0.0
        %627 = vmatprep.subr.mxu0 0.0
        %628 = vmatpush2.xpose.msra.mxu0 0.0
        %629 = vmatprep.subr.mxu0 0.0
        %630 = vmatpush2.xpose.msra.mxu0 0.0
        %631 = vmatprep.subr.mxu0 0.0
        %632 = vmatpush2.xpose.msra.mxu0 0.0
        %633 = vmatprep.subr.mxu0 0.0
        %634 = vmatpush2.xpose.msra.mxu0 0.0
        %635 = vmatprep.subr.mxu0 0.0
        %636 = vmatpush2.xpose.msra.mxu0 0.0
        %637 = vmatprep.mubr.f32.mxu0 0.0
        %638 = vmatmul.mubr.f32.gmra.mxu0 %v565
        %v639 = vpop.f32.mrf.mxu0
        %v640 = vadd.f32 0.0, %v639
        %v641 = vpop.f32.mrf.mxu0
        %642 = vdwg.mxu0
        %v644 = vsel %vm563, %v453, 0
        %v647 = vsel %vm563, %v555, 0
        %v650 = vsel %vm563, %v560, 0
        %652 = vmatprep.subr.mxu0 0.0
        %653 = vmatpush1.xpose.msra.mxu0 0.0
        %654 = vmatprep.subr.mxu0 0.0
        %655 = vmatpush1.xpose.msra.mxu0 0.0
        %656 = vmatprep.subr.mxu0 0.0
        %657 = vmatpush1.xpose.msra.mxu0 0.0
        %658 = vmatprep.subr.mxu0 0.0
        %659 = vmatpush1.xpose.msra.mxu0 0.0
        %660 = vmatprep.subr.mxu0 0.0
        %661 = vmatpush1.xpose.msra.mxu0 0.0
        %662 = vmatprep.subr.mxu0 0.0
        %663 = vmatpush1.xpose.msra.mxu0 0.0
        %664 = vmatprep.subr.mxu0 0.0
        %665 = vmatpush1.xpose.msra.mxu0 0.0
        %666 = vmatprep.subr.mxu0 0.0
        %667 = vmatpush1.xpose.msra.mxu0 0.0
        %668 = vmatprep.subr.mxu0 0.0
        %669 = vmatpush1.xpose.msra.mxu0 0.0
        %670 = vmatprep.subr.mxu0 0.0
        %671 = vmatpush1.xpose.msra.mxu0 0.0
        %672 = vmatprep.subr.mxu0 0.0
        %673 = vmatpush1.xpose.msra.mxu0 0.0
        %674 = vmatprep.subr.mxu0 0.0
        %675 = vmatpush1.xpose.msra.mxu0 0.0
        %676 = vmatprep.subr.mxu0 0.0
        %677 = vmatpush1.xpose.msra.mxu0 0.0
        %678 = vmatprep.subr.mxu0 0.0
        %679 = vmatpush1.xpose.msra.mxu0 0.0
        %680 = vmatprep.subr.mxu0 0.0
        %681 = vmatpush1.xpose.msra.mxu0 %v650
        %682 = vmatprep.subr.mxu0 0.0
        %683 = vmatpush1.xpose.msra.mxu0 %v647
        %684 = vmatprep.subr.mxu0 0.0
        %685 = vmatpush2.xpose.msra.mxu0 0.0
        %686 = vmatprep.subr.mxu0 0.0
        %687 = vmatpush2.xpose.msra.mxu0 0.0
        %688 = vmatprep.subr.mxu0 0.0
        %689 = vmatpush2.xpose.msra.mxu0 0.0
        %690 = vmatprep.subr.mxu0 0.0
        %691 = vmatpush2.xpose.msra.mxu0 0.0
        %692 = vmatprep.subr.mxu0 0.0
        %693 = vmatpush2.xpose.msra.mxu0 0.0
        %694 = vmatprep.subr.mxu0 0.0
        %695 = vmatpush2.xpose.msra.mxu0 0.0
        %696 = vmatprep.subr.mxu0 0.0
        %697 = vmatpush2.xpose.msra.mxu0 0.0
        %698 = vmatprep.subr.mxu0 0.0
        %699 = vmatpush2.xpose.msra.mxu0 0.0
        %700 = vmatprep.subr.mxu0 0.0
        %701 = vmatpush2.xpose.msra.mxu0 0.0
        %702 = vmatprep.subr.mxu0 0.0
        %703 = vmatpush2.xpose.msra.mxu0 0.0
        %704 = vmatprep.subr.mxu0 0.0
        %705 = vmatpush2.xpose.msra.mxu0 0.0
        %706 = vmatprep.subr.mxu0 0.0
        %707 = vmatpush2.xpose.msra.mxu0 0.0
        %708 = vmatprep.subr.mxu0 0.0
        %709 = vmatpush2.xpose.msra.mxu0 0.0
        %710 = vmatprep.subr.mxu0 0.0
        %711 = vmatpush2.xpose.msra.mxu0 0.0
        %712 = vmatprep.subr.mxu0 0.0
        %713 = vmatpush2.xpose.msra.mxu0 0.0
        %714 = vmatprep.subr.mxu0 0.0
        %715 = vmatpush2.xpose.msra.mxu0 0.0
        %716 = vmatprep.mubr.f32.mxu0 0.0
        %717 = vmatmul.mubr.f32.gmra.mxu0 %v644
        %v718 = vpop.f32.mrf.mxu0
        %v719 = vadd.f32 0.0, %v718
        %v720 = vpop.f32.mrf.mxu0
        %721 = vdwg.mxu0
        %v722 = vsel %vm465, %v640, -inf
        %723 = vmax.xlane.f32.xlu0 %v722
        %v724 = vpop.xlane.xlu0 %723
        %v725 = vsel %vm465, %v719, -inf
        %726 = vmax.xlane.f32.xlu0 %v725
        %v727 = vpop.xlane.xlu0 %726
        %v728 = vsub.f32 %v640, %v724
        %v729 = vsub.f32 %v719, %v727
        %v730 = vmul.f32 %v728, 1.442695
        %v731 = vpow.pop %v730
        %v732 = vmul.f32 %v729, 1.442695
        %v733 = vpow.pop %v732
        %v734 = vsel %vm465, %v731, 0.0
        %735 = vadd.xlane.f32.xlu0 %v734
        %v736 = vpop.xlane.xlu0 %735
        %v737 = vsel %vm465, %v733, 0.0
        %738 = vadd.xlane.f32.xlu0 %v737
        %v739 = vpop.xlane.xlu0 %738
        %v740 = vrcp.pop %v736
        %v741 = vrcp.pop %v739
        %v742 = vmul.f32 %v731, %v740
        %v743 = vmul.f32 %v733, %v741
        %744 = vrot.lane.b32.xlu0 %v545, 120
        %v745 = vpop.permute.xlu0 %744
        %746 = vrot.lane.b32.xlu0 %v550, 120
        %v747 = vpop.permute.xlu0 %746
        %v751 = vsel %vm465, %v742, 0
        %753 = vmatprep.subr.mxu0 0.0
        %754 = vmatpush1.msra.mxu0 0.0
        %755 = vmatprep.subr.mxu0 0.0
        %756 = vmatpush1.msra.mxu0 0.0
        %757 = vmatprep.subr.mxu0 0.0
        %758 = vmatpush1.msra.mxu0 0.0
        %759 = vmatprep.subr.mxu0 0.0
        %760 = vmatpush1.msra.mxu0 0.0
        %761 = vmatprep.subr.mxu0 0.0
        %762 = vmatpush1.msra.mxu0 0.0
        %763 = vmatprep.subr.mxu0 0.0
        %764 = vmatpush1.msra.mxu0 0.0
        %765 = vmatprep.subr.mxu0 0.0
        %766 = vmatpush1.msra.mxu0 0.0
        %767 = vmatprep.subr.mxu0 0.0
        %768 = vmatpush1.msra.mxu0 0.0
        %769 = vmatprep.subr.mxu0 0.0
        %770 = vmatpush1.msra.mxu0 0.0
        %771 = vmatprep.subr.mxu0 0.0
        %772 = vmatpush1.msra.mxu0 0.0
        %773 = vmatprep.subr.mxu0 0.0
        %774 = vmatpush1.msra.mxu0 0.0
        %775 = vmatprep.subr.mxu0 0.0
        %776 = vmatpush1.msra.mxu0 0.0
        %777 = vmatprep.subr.mxu0 0.0
        %778 = vmatpush1.msra.mxu0 0.0
        %779 = vmatprep.subr.mxu0 0.0
        %780 = vmatpush1.msra.mxu0 0.0
        %781 = vmatprep.subr.mxu0 0.0
        %782 = vmatpush1.msra.mxu0 %v747
        %783 = vmatprep.subr.mxu0 0.0
        %784 = vmatpush1.msra.mxu0 %v745
        %785 = vmatprep.subr.mxu0 0.0
        %786 = vmatpush2.msra.mxu0 0.0
        %787 = vmatprep.subr.mxu0 0.0
        %788 = vmatpush2.msra.mxu0 0.0
        %789 = vmatprep.subr.mxu0 0.0
        %790 = vmatpush2.msra.mxu0 0.0
        %791 = vmatprep.subr.mxu0 0.0
        %792 = vmatpush2.msra.mxu0 0.0
        %793 = vmatprep.subr.mxu0 0.0
        %794 = vmatpush2.msra.mxu0 0.0
        %795 = vmatprep.subr.mxu0 0.0
        %796 = vmatpush2.msra.mxu0 0.0
        %797 = vmatprep.subr.mxu0 0.0
        %798 = vmatpush2.msra.mxu0 0.0
        %799 = vmatprep.subr.mxu0 0.0
        %800 = vmatpush2.msra.mxu0 0.0
        %801 = vmatprep.subr.mxu0 0.0
        %802 = vmatpush2.msra.mxu0 0.0
        %803 = vmatprep.subr.mxu0 0.0
        %804 = vmatpush2.msra.mxu0 0.0
        %805 = vmatprep.subr.mxu0 0.0
        %806 = vmatpush2.msra.mxu0 0.0
        %807 = vmatprep.subr.mxu0 0.0
        %808 = vmatpush2.msra.mxu0 0.0
        %809 = vmatprep.subr.mxu0 0.0
        %810 = vmatpush2.msra.mxu0 0.0
        %811 = vmatprep.subr.mxu0 0.0
        %812 = vmatpush2.msra.mxu0 0.0
        %813 = vmatprep.subr.mxu0 0.0
        %814 = vmatpush2.msra.mxu0 0.0
        %815 = vmatprep.subr.mxu0 0.0
        %816 = vmatpush2.msra.mxu0 0.0
        %817 = vmatprep.mubr.f32.mxu0 0.0
        %818 = vmatmul.mubr.f32.gmra.mxu0 %v751
        %v819 = vpop.f32.mrf.mxu0
        %v820 = vadd.f32 0.0, %v819
        %v821 = vpop.f32.mrf.mxu0
        %822 = vdwg.mxu0
        %823 = vrot.lane.b32.xlu0 %v555, 120
        %v824 = vpop.permute.xlu0 %823
        %825 = vrot.lane.b32.xlu0 %v560, 120
        %v826 = vpop.permute.xlu0 %825
        %v830 = vsel %vm465, %v743, 0
        %832 = vmatprep.subr.mxu0 0.0
        %833 = vmatpush1.msra.mxu0 0.0
        %834 = vmatprep.subr.mxu0 0.0
        %835 = vmatpush1.msra.mxu0 0.0
        %836 = vmatprep.subr.mxu0 0.0
        %837 = vmatpush1.msra.mxu0 0.0
        %838 = vmatprep.subr.mxu0 0.0
        %839 = vmatpush1.msra.mxu0 0.0
        %840 = vmatprep.subr.mxu0 0.0
        %841 = vmatpush1.msra.mxu0 0.0
        %842 = vmatprep.subr.mxu0 0.0
        %843 = vmatpush1.msra.mxu0 0.0
        %844 = vmatprep.subr.mxu0 0.0
        %845 = vmatpush1.msra.mxu0 0.0
        %846 = vmatprep.subr.mxu0 0.0
        %847 = vmatpush1.msra.mxu0 0.0
        %848 = vmatprep.subr.mxu0 0.0
        %849 = vmatpush1.msra.mxu0 0.0
        %850 = vmatprep.subr.mxu0 0.0
        %851 = vmatpush1.msra.mxu0 0.0
        %852 = vmatprep.subr.mxu0 0.0
        %853 = vmatpush1.msra.mxu0 0.0
        %854 = vmatprep.subr.mxu0 0.0
        %855 = vmatpush1.msra.mxu0 0.0
        %856 = vmatprep.subr.mxu0 0.0
        %857 = vmatpush1.msra.mxu0 0.0
        %858 = vmatprep.subr.mxu0 0.0
        %859 = vmatpush1.msra.mxu0 0.0
        %860 = vmatprep.subr.mxu0 0.0
        %861 = vmatpush1.msra.mxu0 %v826
        %862 = vmatprep.subr.mxu0 0.0
        %863 = vmatpush1.msra.mxu0 %v824
        %864 = vmatprep.subr.mxu0 0.0
        %865 = vmatpush2.msra.mxu0 0.0
        %866 = vmatprep.subr.mxu0 0.0
        %867 = vmatpush2.msra.mxu0 0.0
        %868 = vmatprep.subr.mxu0 0.0
        %869 = vmatpush2.msra.mxu0 0.0
        %870 = vmatprep.subr.mxu0 0.0
        %871 = vmatpush2.msra.mxu0 0.0
        %872 = vmatprep.subr.mxu0 0.0
        %873 = vmatpush2.msra.mxu0 0.0
        %874 = vmatprep.subr.mxu0 0.0
        %875 = vmatpush2.msra.mxu0 0.0
        %876 = vmatprep.subr.mxu0 0.0
        %877 = vmatpush2.msra.mxu0 0.0
        %878 = vmatprep.subr.mxu0 0.0
        %879 = vmatpush2.msra.mxu0 0.0
        %880 = vmatprep.subr.mxu0 0.0
        %881 = vmatpush2.msra.mxu0 0.0
        %882 = vmatprep.subr.mxu0 0.0
        %883 = vmatpush2.msra.mxu0 0.0
        %884 = vmatprep.subr.mxu0 0.0
        %885 = vmatpush2.msra.mxu0 0.0
        %886 = vmatprep.subr.mxu0 0.0
        %887 = vmatpush2.msra.mxu0 0.0
        %888 = vmatprep.subr.mxu0 0.0
        %889 = vmatpush2.msra.mxu0 0.0
        %890 = vmatprep.subr.mxu0 0.0
        %891 = vmatpush2.msra.mxu0 0.0
        %892 = vmatprep.subr.mxu0 0.0
        %893 = vmatpush2.msra.mxu0 0.0
        %894 = vmatprep.subr.mxu0 0.0
        %895 = vmatpush2.msra.mxu0 0.0
        %896 = vmatprep.mubr.f32.mxu0 0.0
        %897 = vmatmul.mubr.f32.gmra.mxu0 %v830
        %v898 = vpop.f32.mrf.mxu0
        %v899 = vadd.f32 0.0, %v898
        %v900 = vpop.f32.mrf.mxu0
        %901 = vdwg.mxu0
        %v902 = vld [vmem:[%s356] sm:$0xff]
        %v904 = vsel %vm563, %v820, 0
        %v907 = vsel %vm563, %v899, 0
        %909 = vmatprep.subr.mxu0 0.0
        %910 = vmatpush1.msra.mxu0 0.0
        %911 = vmatprep.subr.mxu0 0.0
        %912 = vmatpush1.msra.mxu0 0.0
        %913 = vmatprep.subr.mxu0 0.0
        %914 = vmatpush1.msra.mxu0 0.0
        %915 = vmatprep.subr.mxu0 0.0
        %916 = vmatpush1.msra.mxu0 0.0
        %917 = vmatprep.subr.mxu0 0.0
        %918 = vmatpush1.msra.mxu0 0.0
        %919 = vmatprep.subr.mxu0 0.0
        %920 = vmatpush1.msra.mxu0 0.0
        %921 = vmatprep.subr.mxu0 0.0
        %922 = vmatpush1.msra.mxu0 0.0
        %923 = vmatprep.subr.mxu0 0.0
        %924 = vmatpush1.msra.mxu0 0.0
        %925 = vmatprep.subr.mxu0 0.0
        %926 = vmatpush1.msra.mxu0 0.0
        %927 = vmatprep.subr.mxu0 0.0
        %928 = vmatpush1.msra.mxu0 0.0
        %929 = vmatprep.subr.mxu0 0.0
        %930 = vmatpush1.msra.mxu0 0.0
        %931 = vmatprep.subr.mxu0 0.0
        %932 = vmatpush1.msra.mxu0 0.0
        %933 = vmatprep.subr.mxu0 0.0
        %934 = vmatpush1.msra.mxu0 0.0
        %935 = vmatprep.subr.mxu0 0.0
        %936 = vmatpush1.msra.mxu0 0.0
        %937 = vmatprep.subr.mxu0 0.0
        %938 = vmatpush1.msra.mxu0 0.0
        %939 = vmatprep.subr.mxu0 0.0
        %940 = vmatpush1.msra.mxu0 %v902
        %941 = vmatprep.subr.mxu0 0.0
        %942 = vmatpush2.msra.mxu0 0.0
        %943 = vmatprep.subr.mxu0 0.0
        %944 = vmatpush2.msra.mxu0 0.0
        %945 = vmatprep.subr.mxu0 0.0
        %946 = vmatpush2.msra.mxu0 0.0
        %947 = vmatprep.subr.mxu0 0.0
        %948 = vmatpush2.msra.mxu0 0.0
        %949 = vmatprep.subr.mxu0 0.0
        %950 = vmatpush2.msra.mxu0 0.0
        %951 = vmatprep.subr.mxu0 0.0
        %952 = vmatpush2.msra.mxu0 0.0
        %953 = vmatprep.subr.mxu0 0.0
        %954 = vmatpush2.msra.mxu0 0.0
        %955 = vmatprep.subr.mxu0 0.0
        %956 = vmatpush2.msra.mxu0 0.0
        %957 = vmatprep.subr.mxu0 0.0
        %958 = vmatpush2.msra.mxu0 0.0
        %959 = vmatprep.subr.mxu0 0.0
        %960 = vmatpush2.msra.mxu0 0.0
        %961 = vmatprep.subr.mxu0 0.0
        %962 = vmatpush2.msra.mxu0 0.0
        %963 = vmatprep.subr.mxu0 0.0
        %964 = vmatpush2.msra.mxu0 0.0
        %965 = vmatprep.subr.mxu0 0.0
        %966 = vmatpush2.msra.mxu0 0.0
        %967 = vmatprep.subr.mxu0 0.0
        %968 = vmatpush2.msra.mxu0 0.0
        %969 = vmatprep.subr.mxu0 0.0
        %970 = vmatpush2.msra.mxu0 0.0
        %971 = vmatprep.subr.mxu0 0.0
        %972 = vmatpush2.msra.mxu0 0.0
        %973 = vmatprep.mubr.f32.mxu0 0.0
        %974 = vmatmul.mubr.f32.gmra.mxu0 %v904
        %v975 = vpop.f32.mrf.mxu0
        %v976 = vadd.f32 0.0, %v975
        %v977 = vpop.f32.mrf.mxu0
        %978 = vmatprep.mubr.f32.mxu0 0.0
        %979 = vmatmul.mubr.f32.gmra.mxu0 %v907
        %v980 = vpop.f32.mrf.mxu0
        %v981 = vadd.f32 0.0, %v980
        %v982 = vpop.f32.mrf.mxu0
        %983 = vdwg.mxu0
        %p984 = scmp.eq.s32.totalorder %s20, 0
        // Predicated region
        $region53: #{tpu_custom_call.1} parent=51 // pred_check
          %p985 = pneg %p984
        $region54: #{tpu_custom_call.1} parent=51 // pred_check_branch
          %987 = sbr.rel (%p985) target = $region56
        $region55: #{tpu_custom_call.1} parent=51 // pred_region
          %v988 = vld [vmem:[%s7] sm:$0x1]
          %v990 = vlaneseq
          %v991 = vshrl.u32 %v990, 7
          %v992 = vsub.s32 0, %v991
          %v993 = vrot.slane %v988, %v992
          %995 = vst.msk [vmem:[#allocation2] sm:$0xff] %vm374, %v993
          %996 = vst.msk [vmem:[#allocation2 + $0x8] sm:$0xff] %vm374, %v993
        $region56: #{tpu_custom_call.1} parent=51 // pred_fallthru
          _
        %v997 = vld [vmem:[#allocation2] sm:$0xff]
        %v998 = vld [vmem:[#allocation2 + $0x8] sm:$0xff]
        %v999 = vadd.f32 %v997, %v976
        %v1000 = vadd.f32 %v998, %v981
        %1001 = vst.msk [vmem:[#allocation2] sm:$0xff] %vm374, %v999
        %1002 = vst.msk [vmem:[#allocation2 + $0x8] sm:$0xff] %vm374, %v1000
        %v1003 = vld [vmem:[#allocation2] sm:$0xff]
        %v1004 = vld [vmem:[#allocation2 + $0x8] sm:$0xff]
        %1005 = vst.msk [vmem:[#allocation3] sm:$0xff] %vm374, %v1003
        %1006 = vst.msk [vmem:[#allocation3 + $0x8] sm:$0xff] %vm374, %v1004
        // Predicated region
        $region57: #{tpu_custom_call.1} parent=51 // pred_check
          %p1007 = pneg %p226
        $region58: #{tpu_custom_call.1} parent=51 // pred_check_branch
          %1009 = sbr.rel (%p1007) target = $region60
        $region59: #{tpu_custom_call.1} parent=51 // pred_region
          %s1011 = ssub.s32 256, 256
          %1012 = vsyncadd [#allocation4], %s1011
          %s1013 = sshll.u32 [#allocation3], 4
          %s1014 = int_to_ptr.vmem [resolvable:$true] %s1013
          %1019 = dma.vmem_to_hbm [thread:$0]  %s1014, 256, %s8, [#allocation4], 128, 128, 8
        $region60: #{tpu_custom_call.1} parent=51 // pred_fallthru
          _
        // Predicated region
        $region61: #{tpu_custom_call.1} parent=51 // pred_check
          %p1020 = pneg %p226
        $region62: #{tpu_custom_call.1} parent=51 // pred_check_branch
          %1022 = sbr.rel (%p1020) target = $region64
        $region63: #{tpu_custom_call.1} parent=51 // pred_region
          %1023 = dma.done [#allocation4], 256
        $region64: #{tpu_custom_call.1} parent=51 // pred_fallthru
          _
      $region52: #{tpu_custom_call.1} parent=5 // pred_fallthru
        _
      %p1024 = scmp.le.s32.totalorder 2, %s15
      // Predicated region
      $region65: #{tpu_custom_call.1} parent=5 // pred_check
        %p1025 = pneg %p1024
      $region66: #{tpu_custom_call.1} parent=5 // pred_check_branch
        %1027 = sbr.rel (%p1025) target = $region68
      $region67: #{tpu_custom_call.1} parent=5 // pred_region
        %s1028 = ssub.s32 %s15, 2
      $region68: #{tpu_custom_call.1} parent=5 // pred_fallthru
        _
    $region6: #{tpu_custom_call.1} parent=1 // loop_footer
      %s19 = sadd.s32 1, %s15
    $region7: #{tpu_custom_call.1} parent=1 // loop_footer_branch
      %14 = sbr.rel target = $region3
    $region8: #{tpu_custom_call.1} parent=1 // loop_exit
      _
    %1029 = vsyncpa [#allocation4], 1
    %s1030 = scalar_lea.sflag [#allocation4], 1
    %1031 = vsyncpa %s1030, 1

</llo_original>
